<compile_context>
chip_gen: v7x
topology: tpu7x:2x2x1
jax: 0.10.0
libtpu: 0.0.40
codegen_flags: <defaults>
</compile_context>

<pallas_src>
import jax
import jax.numpy as jnp
from jax.experimental import pallas as pl
from jax.experimental.pallas import tpu as pltpu

H1, H2, OUT = 16, 8, 3
LANE = 128      # lane width for the two hidden matmuls
OUT_PAD = 8     # stored output width (full last dim of the HBM output array)


def _round_up(n, m):
    return ((n + m - 1) // m) * m


def _cdiv(a, b):
    return (a + b - 1) // b


def _pad_to(a, shape):
    return jnp.pad(a, [(0, s - d) for d, s in zip(a.shape, shape)])


def mlp_kernel(x_ref, w1_ref, w2_ref, w3_ref, b_ref, o_ref):
    # x_ref: (tile_b, in_size) f32 — cast to bf16 here (VPU op, hidden under DMA).
    # w1: (in, 128) bf16, w2: (128, 128) bf16, w3: (128, 8) bf16 (all zero-padded).
    # b_ref: (8, 128) f32; rows 0/1/2 hold b1/b2/b3 (padded lanes exactly 0).
    x = x_ref[...].astype(jnp.bfloat16)
    b1 = b_ref[0:1, :]                     # (1, 128)
    b2 = b_ref[1:2, :]                     # (1, 128)
    b3 = b_ref[2:3, :][:, :OUT_PAD]        # (1, 8)

    # fc1 + ReLU (bf16 x bf16 on the MXU, f32 accumulate; elementwise in f32)
    h1 = jnp.dot(x, w1_ref[...], preferred_element_type=jnp.float32)
    h1 = jnp.maximum(h1 + b1, 0.0)

    # fc2 + ReLU
    h2 = jnp.dot(h1.astype(jnp.bfloat16), w2_ref[...],
                 preferred_element_type=jnp.float32)
    h2 = jnp.maximum(h2 + b2, 0.0)

    # fc3 (no activation) — only 8 lanes computed/stored (tiny HBM writeback)
    o_ref[...] = jnp.dot(h2.astype(jnp.bfloat16), w3_ref[...],
                         preferred_element_type=jnp.float32) + b3


def prepare_params(params):
    """One-time padding / bf16 cast / bias packing (hoisted out of the per-call path)."""
    in_size = params["w1"].shape[0]
    w1p = _pad_to(params["w1"], (in_size, LANE)).astype(jnp.bfloat16)
    w2p = _pad_to(params["w2"], (LANE, LANE)).astype(jnp.bfloat16)
    w3p = _pad_to(params["w3"], (LANE, OUT_PAD)).astype(jnp.bfloat16)
    bias = jnp.zeros((8, LANE), jnp.float32)
    bias = bias.at[0, :H1].set(params["b1"].reshape(-1))
    bias = bias.at[1, :H2].set(params["b2"].reshape(-1))
    bias = bias.at[2, :OUT].set(params["b3"].reshape(-1))
    return {"w1p": w1p, "w2p": w2p, "w3p": w3p, "bias": bias}


def _choose_tile(B, tile_b):
    tile_b = max(8, _round_up(tile_b, 8))
    # Prefer >= 2 grid steps for moderate batches so v7x's 2 TensorCores both get work
    # (on 1-TC chips the extra grid step costs ~0.35 us — negligible).
    if B >= 16:
        tile_b = min(tile_b, _round_up(_cdiv(B, 2), 8))
    return min(tile_b, _round_up(B, 8))


def risk_mlp_forward(x, prepared, tile_b=2048):
    """x: (B, input_size) f32. prepared: output of prepare_params()."""
    B, in_size = x.shape
    tile_b = _choose_tile(B, tile_b)
    grid = (_cdiv(B, tile_b),)

    w1p, w2p, w3p, bias = (prepared["w1p"], prepared["w2p"],
                           prepared["w3p"], prepared["bias"])

    n_rows = grid[0] * tile_b
    flops = 2 * n_rows * (in_size * LANE + LANE * LANE + LANE * OUT_PAD)
    bytes_accessed = (B * in_size * 4                                   # x read (f32)
                      + (w1p.size + w2p.size + w3p.size) * 2            # bf16 weights
                      + bias.size * 4
                      + B * OUT_PAD * 4)                                # output write

    out = pl.pallas_call(
        mlp_kernel,
        out_shape=jax.ShapeDtypeStruct((B, OUT_PAD), jnp.float32),
        grid=grid,
        in_specs=[
            pl.BlockSpec((tile_b, in_size), lambda i: (i, 0)),   # pipelined x tile (f32)
            pl.BlockSpec((in_size, LANE), lambda i: (0, 0)),     # VMEM-resident weights
            pl.BlockSpec((LANE, LANE), lambda i: (0, 0)),
            pl.BlockSpec((LANE, OUT_PAD), lambda i: (0, 0)),
            pl.BlockSpec((8, LANE), lambda i: (0, 0)),           # packed biases
        ],
        out_specs=pl.BlockSpec((tile_b, OUT_PAD), lambda i: (i, 0)),
        compiler_params=pltpu.CompilerParams(
            dimension_semantics=("parallel",),       # megacore / v7x 2-TC split
            vmem_limit_bytes=32 * 1024 * 1024),      # safe on v5e's 16 MiB default
        cost_estimate=pl.CostEstimate(
            flops=flops, transcendentals=0, bytes_accessed=bytes_accessed),
    )(x, w1p, w2p, w3p, bias)

    return out[:, :OUT]


def init_params(key, input_size):
    ks = jax.random.split(key, 6)

    # PyTorch-style uniform fan-in init; weights stored as (in, out) so the
    # kernel computes y = x @ W + b (== PyTorch x @ W.T + b).
    def lin(kw, kb, fan_in, fan_out):
        bound = 1.0 / jnp.sqrt(fan_in)
        w = jax.random.uniform(kw, (fan_in, fan_out), jnp.float32, -bound, bound)
        b = jax.random.uniform(kb, (1, fan_out), jnp.float32, -bound, bound)
        return w, b

    w1, b1 = lin(ks[0], ks[1], input_size, H1)
    w2, b2 = lin(ks[2], ks[3], H1, H2)
    w3, b3 = lin(ks[4], ks[5], H2, OUT)
    return {"w1": w1, "b1": b1, "w2": w2, "b2": b2, "w3": w3, "b3": b3}


def reference_forward_bf16(x, p):
    """Mimics the kernel numerics: bf16-rounded dot operands, f32 accumulate."""
    def r(a):
        return a.astype(jnp.bfloat16).astype(jnp.float32)
    h1 = jnp.maximum(r(x) @ r(p["w1"]) + p["b1"], 0.0)
    h2 = jnp.maximum(r(h1) @ r(p["w2"]) + p["b2"], 0.0)
    return r(h2) @ r(p["w3"]) + p["b3"]


def reference_forward_f32(x, p):
    h1 = jnp.maximum(x @ p["w1"] + p["b1"], 0.0)
    h2 = jnp.maximum(h1 @ p["w2"] + p["b2"], 0.0)
    return h2 @ p["w3"] + p["b3"]


if __name__ == "__main__":
    key = jax.random.PRNGKey(0)
    kx, kp, kx2, kx3 = jax.random.split(key, 4)

    batch, input_size = 8, 32
    x = jax.random.normal(kx, (batch, input_size), jnp.float32)
    params = init_params(kp, input_size)
    prepared = prepare_params(params)   # one-time padding/cast, reused across calls

    out = jax.block_until_ready(risk_mlp_forward(x, prepared))
    assert out.shape == (batch, OUT)
    assert jnp.allclose(out, reference_forward_bf16(x, params), atol=1e-4, rtol=1e-4)
    # Sanity vs. pure-f32 reference (bf16 operand rounding only).
    assert jnp.allclose(out, reference_forward_f32(x, params), atol=5e-2, rtol=5e-2)

    # Non-divisible batch with multiple grid tiles + masked partial last block.
    batch2 = 20
    x2 = jax.random.normal(kx2, (batch2, input_size), jnp.float32)
    out2 = jax.block_until_ready(risk_mlp_forward(x2, prepared, tile_b=8))
    assert out2.shape == (batch2, OUT)
    assert jnp.allclose(out2, reference_forward_bf16(x2, params), atol=1e-4, rtol=1e-4)

    # Default tile path: auto-split into >=2 tiles, ragged last block, no batch pad.
    batch3 = 300
    x3 = jax.random.normal(kx3, (batch3, input_size), jnp.float32)
    out3 = jax.block_until_ready(risk_mlp_forward(x3, prepared))
    assert out3.shape == (batch3, OUT)
    assert jnp.allclose(out3, reference_forward_bf16(x3, params), atol=1e-4, rtol=1e-4)

    print("KERNEL_OK")
</pallas_src>

<mosaic_0001>
module attributes {stable_mosaic.version = 11 : i64} {
  func.func @mlp_kernel(%arg0: i32, %arg1: memref<8x32xf32, #tpu.memory_space<vmem>>, %arg2: memref<32x128xbf16, #tpu.memory_space<vmem>>, %arg3: memref<128x128xbf16, #tpu.memory_space<vmem>>, %arg4: memref<128x8xbf16, #tpu.memory_space<vmem>>, %arg5: memref<8x128xf32, #tpu.memory_space<vmem>>, %arg6: memref<8x8xf32, #tpu.memory_space<vmem>>) attributes {dimension_semantics = [#tpu.dimension_semantics<parallel>], iteration_bounds = array<i64: 1>, scalar_prefetch = 0 : i64, scratch_operands = 0 : i64, tpu.core_type = #tpu.core_type<tc>, window_params = [{transform_indices = @transform_0, window_bounds = array<i64: 8, 32>}, {pipeline_mode = #tpu.pipeline_mode<synchronous>, transform_indices = @transform_1, window_bounds = array<i64: 32, 128>}, {pipeline_mode = #tpu.pipeline_mode<synchronous>, transform_indices = @transform_2, window_bounds = array<i64: 128, 128>}, {pipeline_mode = #tpu.pipeline_mode<synchronous>, transform_indices = @transform_3, window_bounds = array<i64: 128, 8>}, {pipeline_mode = #tpu.pipeline_mode<synchronous>, transform_indices = @transform_4, window_bounds = array<i64: 8, 128>}, {transform_indices = @transform_5, window_bounds = array<i64: 8, 8>}]} {
    %c0 = arith.constant 0 : index
    %c0_0 = arith.constant 0 : index
    %0 = vector.load %arg1[%c0, %c0_0] : memref<8x32xf32, #tpu.memory_space<vmem>>, vector<8x32xf32>
    %1 = arith.truncf %0 : vector<8x32xf32> to vector<8x32xbf16>
    %c0_1 = arith.constant 0 : index
    %c0_2 = arith.constant 0 : index
    %2 = vector.load %arg5[%c0_1, %c0_2] : memref<8x128xf32, #tpu.memory_space<vmem>>, vector<1x128xf32>
    %c1 = arith.constant 1 : index
    %c0_3 = arith.constant 0 : index
    %3 = vector.load %arg5[%c1, %c0_3] : memref<8x128xf32, #tpu.memory_space<vmem>>, vector<1x128xf32>
    %c2 = arith.constant 2 : index
    %c0_4 = arith.constant 0 : index
    %4 = vector.load %arg5[%c2, %c0_4] : memref<8x128xf32, #tpu.memory_space<vmem>>, vector<1x128xf32>
    %5 = vector.extract_strided_slice %4 {offsets = [0, 0], sizes = [1, 8], strides = [1, 1]} : vector<1x128xf32> to vector<1x8xf32>
    %c0_5 = arith.constant 0 : index
    %c0_6 = arith.constant 0 : index
    %6 = vector.load %arg2[%c0_5, %c0_6] : memref<32x128xbf16, #tpu.memory_space<vmem>>, vector<32x128xbf16>
    %cst = arith.constant dense<0.000000e+00> : vector<8x128xf32>
    %7 = tpu.matmul %1, %6, %cst {dimension_numbers = #tpu.dot_dimension_numbers<[1], [0], [0], [1], [0, 0, 1, 1], [], []>} : vector<8x32xbf16>, vector<32x128xbf16>, vector<8x128xf32> -> vector<8x128xf32>
    %8 = vector.broadcast %2 : vector<1x128xf32> to vector<8x128xf32>
    %9 = arith.addf %7, %8 : vector<8x128xf32>
    %cst_7 = arith.constant 0.000000e+00 : f32
    %10 = vector.broadcast %cst_7 : f32 to vector<8x128xf32>
    %11 = arith.maximumf %9, %10 : vector<8x128xf32>
    %12 = arith.truncf %11 : vector<8x128xf32> to vector<8x128xbf16>
    %c0_8 = arith.constant 0 : index
    %c0_9 = arith.constant 0 : index
    %13 = vector.load %arg3[%c0_8, %c0_9] : memref<128x128xbf16, #tpu.memory_space<vmem>>, vector<128x128xbf16>
    %cst_10 = arith.constant dense<0.000000e+00> : vector<8x128xf32>
    %14 = tpu.matmul %12, %13, %cst_10 {dimension_numbers = #tpu.dot_dimension_numbers<[1], [0], [0], [1], [0, 0, 1, 1], [], []>} : vector<8x128xbf16>, vector<128x128xbf16>, vector<8x128xf32> -> vector<8x128xf32>
    %15 = vector.broadcast %3 : vector<1x128xf32> to vector<8x128xf32>
    %16 = arith.addf %14, %15 : vector<8x128xf32>
    %cst_11 = arith.constant 0.000000e+00 : f32
    %17 = vector.broadcast %cst_11 : f32 to vector<8x128xf32>
    %18 = arith.maximumf %16, %17 : vector<8x128xf32>
    %19 = arith.truncf %18 : vector<8x128xf32> to vector<8x128xbf16>
    %c0_12 = arith.constant 0 : index
    %c0_13 = arith.constant 0 : index
    %20 = vector.load %arg4[%c0_12, %c0_13] : memref<128x8xbf16, #tpu.memory_space<vmem>>, vector<128x8xbf16>
    %cst_14 = arith.constant dense<0.000000e+00> : vector<8x8xf32>
    %21 = tpu.matmul %19, %20, %cst_14 {dimension_numbers = #tpu.dot_dimension_numbers<[1], [0], [0], [1], [0, 0, 1, 1], [], []>} : vector<8x128xbf16>, vector<128x8xbf16>, vector<8x8xf32> -> vector<8x8xf32>
    %22 = vector.broadcast %5 : vector<1x8xf32> to vector<8x8xf32>
    %23 = arith.addf %21, %22 : vector<8x8xf32>
    %c0_15 = arith.constant 0 : index
    %c0_16 = arith.constant 0 : index
    %24 = vector.load %arg6[%c0_15, %c0_16] : memref<8x8xf32, #tpu.memory_space<vmem>>, vector<8x8xf32>
    tpu.vector_store %arg6[%c0_15, %c0_16], %23 {strides = array<i32>} : memref<8x8xf32, #tpu.memory_space<vmem>>, vector<8x8xf32>,
    return
  }
  func.func @transform_0(%arg0: i32) -> (i32, i32) {
    %c0_i32 = arith.constant 0 : i32
    %c0_i32_0 = arith.constant 0 : i32
    return %arg0, %c0_i32 : i32, i32
  }
  func.func @transform_1(%arg0: i32) -> (i32, i32) {
    %c0_i32 = arith.constant 0 : i32
    %c0_i32_0 = arith.constant 0 : i32
    %c0_i32_1 = arith.constant 0 : i32
    return %c0_i32, %c0_i32_0 : i32, i32
  }
  func.func @transform_2(%arg0: i32) -> (i32, i32) {
    %c0_i32 = arith.constant 0 : i32
    %c0_i32_0 = arith.constant 0 : i32
    %c0_i32_1 = arith.constant 0 : i32
    return %c0_i32, %c0_i32_0 : i32, i32
  }
  func.func @transform_3(%arg0: i32) -> (i32, i32) {
    %c0_i32 = arith.constant 0 : i32
    %c0_i32_0 = arith.constant 0 : i32
    %c0_i32_1 = arith.constant 0 : i32
    return %c0_i32, %c0_i32_0 : i32, i32
  }
  func.func @transform_4(%arg0: i32) -> (i32, i32) {
    %c0_i32 = arith.constant 0 : i32
    %c0_i32_0 = arith.constant 0 : i32
    %c0_i32_1 = arith.constant 0 : i32
    return %c0_i32, %c0_i32_0 : i32, i32
  }
  func.func @transform_5(%arg0: i32) -> (i32, i32) {
    %c0_i32 = arith.constant 0 : i32
    %c0_i32_0 = arith.constant 0 : i32
    return %arg0, %c0_i32 : i32, i32
  }
}

</mosaic_0001>

<llo_original>
// kernel: tpu_custom_call.1
$region0: #{tpu_custom_call.1}
  #allocation0 [shape = 'u32[]', space=smem, size = 0x4, offset = 0x4, fixed_abs, tag = 'smem constant byte address 0x4 - core index']
  #allocation1 [shape = 'u32[144,128]{1,0:T(1,128)}', space=vmem, size = 0x12000, scoped, tag = 'internal scratch']
  %s0 = inlined_call_operand.vmem [shape: f32[8,32], index: 0, kind: input, shape index: {}]
  %s1 = inlined_call_operand.hbm [shape: bf16[32,128], index: 1, kind: input, shape index: {}]
  %s2 = inlined_call_operand.vmem [shape: bf16[128,128], index: 2, kind: input, shape index: {}]
  %s3 = inlined_call_operand.vmem [shape: bf16[128,8], index: 3, kind: input, shape index: {}]
  %s4 = inlined_call_operand.vmem [shape: f32[8,128], index: 4, kind: input, shape index: {}]
  %s5 = inlined_call_operand.hbm [shape: f32[8,8], index: 5, kind: output, shape index: {}]
  %s6 = sld [smem:[#allocation0]]
  $region34: #{tpu_custom_call.1} parent=0
    _
  %s8 = ssub.s32 1, %s6
  %s9 = scalar_select 0, %s8, %s6
  $region1: #{tpu_custom_call.1} parent=0
    #allocation2 [shape = 'u8[8192]{0}', space=vmem, size = 0x2000, scoped, tag = 'input window, operand 1, single buffered']
    #allocation3 [shape = 's32[1]{0}', space=sflag, size = 0x4, scoped, tag = 'scoped memory for tpu_custom_call.1']
    #allocation4 [shape = 's32[1]{0}', space=sflag, size = 0x4, scoped, tag = 'scoped memory for tpu_custom_call.1']
    #allocation5 [shape = 'u8[4096]{0}', space=vmem, size = 0x1000, scoped, tag = 'output window, operand 0, single buffered']
    %10 = vsyncpa [#allocation3], 0
    %11 = vsyncpa [#allocation4], 0
    // Predicated region
    $region2: #{tpu_custom_call.1} parent=1 // pred_check
      _
    $region3: #{tpu_custom_call.1} parent=1 // pred_check_branch
      %13 = sbr.rel (0) target = $region5
    $region4: #{tpu_custom_call.1} parent=1 // pred_region
      _
    $region5: #{tpu_custom_call.1} parent=1 // pred_fallthru
      _
    // Predicated region
    $region6: #{tpu_custom_call.1} parent=1 // pred_check
      _
    $region7: #{tpu_custom_call.1} parent=1 // pred_check_branch
      %15 = sbr.rel (0) target = $region9
    $region8: #{tpu_custom_call.1} parent=1 // pred_region
      %s17 = ssub.s32 256, 256
      %18 = vsyncadd [#allocation3], %s17
      %s19 = sshll.u32 [#allocation2], 4
      %s20 = int_to_ptr.vmem [resolvable:$true] %s19
      %25 = dma.hbm_to_vmem [thread:$0]  %s1, 256, %s20, [#allocation3], 64, 64, 4
    $region9: #{tpu_custom_call.1} parent=1 // pred_fallthru
      _
    // Predicated region
    $region10: #{tpu_custom_call.1} parent=1 // pred_check
      _
    $region11: #{tpu_custom_call.1} parent=1 // pred_check_branch
      %27 = sbr.rel (0) target = $region13
    $region12: #{tpu_custom_call.1} parent=1 // pred_region
      _
    $region13: #{tpu_custom_call.1} parent=1 // pred_fallthru
      _
    // Predicated region
    $region14: #{tpu_custom_call.1} parent=1 // pred_check
      _
    $region15: #{tpu_custom_call.1} parent=1 // pred_check_branch
      %29 = sbr.rel (0) target = $region17
    $region16: #{tpu_custom_call.1} parent=1 // pred_region
      _
    $region17: #{tpu_custom_call.1} parent=1 // pred_fallthru
      _
    // Predicated region
    $region18: #{tpu_custom_call.1} parent=1 // pred_check
      _
    $region19: #{tpu_custom_call.1} parent=1 // pred_check_branch
      %31 = sbr.rel (0) target = $region21
    $region20: #{tpu_custom_call.1} parent=1 // pred_region
      _
    $region21: #{tpu_custom_call.1} parent=1 // pred_fallthru
      _
    // Predicated region
    $region22: #{tpu_custom_call.1} parent=1 // pred_check
      _
    $region23: #{tpu_custom_call.1} parent=1 // pred_check_branch
      %33 = sbr.rel (0) target = $region25
    $region24: #{tpu_custom_call.1} parent=1 // pred_region
      %34 = dma.done [#allocation3], 256
    $region25: #{tpu_custom_call.1} parent=1 // pred_fallthru
      _
    %v36 = vld [vmem:[%s0] sm:$0xff]
    %v37 = vpack.c.bf16 %v36, %v36
    %v38 = vld [vmem:[%s4] sm:$0x1]
    %v39 = vld [vmem:[%s4 + $0x1] sm:$0x1]
    %v40 = vld [vmem:[%s4 + $0x2] sm:$0x1]
    %v41 = vld [vmem:[#allocation2] sm:$0xf]
    %v42 = vld [vmem:[#allocation2 + $0x4] sm:$0xf]
    %v43 = vld [vmem:[#allocation2 + $0x8] sm:$0xf]
    %v44 = vld [vmem:[#allocation2 + $0xc] sm:$0xf]
    %v45 = vlaneseq
    %v46 = vshrl.u32 %v45, 7
    %v47 = vsub.s32 0, %v46
    %v48 = vrot.slane %v38, %v47
    %v53 = vunpack.c.l.b16 %v41
    %v54 = vunpack.c.l.b16 %v42
    %v55 = vunpack.c.l.b16 %v43
    %v56 = vunpack.c.l.b16 %v44
    %v57 = vpack.c.b16 %v54, %v53
    %v58 = vpack.c.b16 %v56, %v55
    %vm61 = vcmask 261120
    %v63 = vsel %vm61, %v37, 0
    %65 = vmatprep.subr.bf16.mxu0 0
    %66 = vmatpush1.bf16.msra.mxu0 %v57
    %67 = vmatprep.subr.bf16.mxu0 0
    %68 = vmatpush1.bf16.msra.mxu0 %v58
    %69 = vmatprep.subr.bf16.mxu0 0
    %70 = vmatpush1.bf16.msra.mxu0 0
    %71 = vmatprep.subr.bf16.mxu0 0
    %72 = vmatpush1.bf16.msra.mxu0 0
    %73 = vmatprep.subr.bf16.mxu0 0
    %74 = vmatpush1.bf16.msra.mxu0 0
    %75 = vmatprep.subr.bf16.mxu0 0
    %76 = vmatpush1.bf16.msra.mxu0 0
    %77 = vmatprep.subr.bf16.mxu0 0
    %78 = vmatpush1.bf16.msra.mxu0 0
    %79 = vmatprep.subr.bf16.mxu0 0
    %80 = vmatpush1.bf16.msra.mxu0 0
    %81 = vmatprep.subr.bf16.mxu0 0
    %82 = vmatpush1.bf16.msra.mxu0 0
    %83 = vmatprep.subr.bf16.mxu0 0
    %84 = vmatpush1.bf16.msra.mxu0 0
    %85 = vmatprep.subr.bf16.mxu0 0
    %86 = vmatpush1.bf16.msra.mxu0 0
    %87 = vmatprep.subr.bf16.mxu0 0
    %88 = vmatpush1.bf16.msra.mxu0 0
    %89 = vmatprep.subr.bf16.mxu0 0
    %90 = vmatpush1.bf16.msra.mxu0 0
    %91 = vmatprep.subr.bf16.mxu0 0
    %92 = vmatpush1.bf16.msra.mxu0 0
    %93 = vmatprep.subr.bf16.mxu0 0
    %94 = vmatpush1.bf16.msra.mxu0 0
    %95 = vmatprep.subr.bf16.mxu0 0
    %96 = vmatpush1.bf16.msra.mxu0 0
    %97 = vmatprep.mubr.bf16.mxu0 0
    %98 = vmatmul.mubr.bf16.gmra.mrb[0].mxu0 %v63
    %v99 = vpop.f32.mrb[0].mxu0
    %v100 = vadd.f32 %v48, %v99
    %v101 = vpop.f32.mrb[0].mxu0
    %v102 = vpop.f32.mrb[0].mxu0
    %v103 = vpop.f32.mrb[0].mxu0
    %104 = vdwg.mxu0
    %v105 = vmax.f32 %v100, 0.0
    %v106 = vpack.c.bf16 %v105, %v105
    %v107 = vld [vmem:[%s2] sm:$0xf]
    %v108 = vld [vmem:[%s2 + $0x4] sm:$0xf]
    %v109 = vld [vmem:[%s2 + $0x8] sm:$0xf]
    %v110 = vld [vmem:[%s2 + $0xc] sm:$0xf]
    %v111 = vld [vmem:[%s2 + $0x10] sm:$0xf]
    %v112 = vld [vmem:[%s2 + $0x14] sm:$0xf]
    %v113 = vld [vmem:[%s2 + $0x18] sm:$0xf]
    %v114 = vld [vmem:[%s2 + $0x1c] sm:$0xf]
    %v115 = vld [vmem:[%s2 + $0x20] sm:$0xf]
    %v116 = vld [vmem:[%s2 + $0x24] sm:$0xf]
    %v117 = vld [vmem:[%s2 + $0x28] sm:$0xf]
    %v118 = vld [vmem:[%s2 + $0x2c] sm:$0xf]
    %v119 = vld [vmem:[%s2 + $0x30] sm:$0xf]
    %v120 = vld [vmem:[%s2 + $0x34] sm:$0xf]
    %v121 = vld [vmem:[%s2 + $0x38] sm:$0xf]
    %v122 = vld [vmem:[%s2 + $0x3c] sm:$0xf]
    %v123 = vlaneseq
    %v124 = vshrl.u32 %v123, 7
    %v125 = vsub.s32 0, %v124
    %v126 = vrot.slane %v39, %v125
    %v143 = vunpack.c.l.b16 %v107
    %v144 = vunpack.c.l.b16 %v108
    %v145 = vunpack.c.l.b16 %v109
    %v146 = vunpack.c.l.b16 %v110
    %v147 = vunpack.c.l.b16 %v111
    %v148 = vunpack.c.l.b16 %v112
    %v149 = vunpack.c.l.b16 %v113
    %v150 = vunpack.c.l.b16 %v114
    %v151 = vunpack.c.l.b16 %v115
    %v152 = vunpack.c.l.b16 %v116
    %v153 = vunpack.c.l.b16 %v117
    %v154 = vunpack.c.l.b16 %v118
    %v155 = vunpack.c.l.b16 %v119
    %v156 = vunpack.c.l.b16 %v120
    %v157 = vunpack.c.l.b16 %v121
    %v158 = vunpack.c.l.b16 %v122
    %v159 = vpack.c.b16 %v144, %v143
    %v160 = vpack.c.b16 %v146, %v145
    %v161 = vpack.c.b16 %v148, %v147
    %v162 = vpack.c.b16 %v150, %v149
    %v163 = vpack.c.b16 %v152, %v151
    %v164 = vpack.c.b16 %v154, %v153
    %v165 = vpack.c.b16 %v156, %v155
    %v166 = vpack.c.b16 %v158, %v157
    %175 = vmatprep.subr.bf16.mxu0 0
    %176 = vmatpush1.bf16.msra.mxu0 %v159
    %177 = vmatprep.subr.bf16.mxu0 0
    %178 = vmatpush1.bf16.msra.mxu0 %v160
    %179 = vmatprep.subr.bf16.mxu0 0
    %180 = vmatpush1.bf16.msra.mxu0 %v161
    %181 = vmatprep.subr.bf16.mxu0 0
    %182 = vmatpush1.bf16.msra.mxu0 %v162
    %183 = vmatprep.subr.bf16.mxu0 0
    %184 = vmatpush1.bf16.msra.mxu0 %v163
    %185 = vmatprep.subr.bf16.mxu0 0
    %186 = vmatpush1.bf16.msra.mxu0 %v164
    %187 = vmatprep.subr.bf16.mxu0 0
    %188 = vmatpush1.bf16.msra.mxu0 %v165
    %189 = vmatprep.subr.bf16.mxu0 0
    %190 = vmatpush1.bf16.msra.mxu0 %v166
    %191 = vmatprep.subr.bf16.mxu0 0
    %192 = vmatpush1.bf16.msra.mxu0 0
    %193 = vmatprep.subr.bf16.mxu0 0
    %194 = vmatpush1.bf16.msra.mxu0 0
    %195 = vmatprep.subr.bf16.mxu0 0
    %196 = vmatpush1.bf16.msra.mxu0 0
    %197 = vmatprep.subr.bf16.mxu0 0
    %198 = vmatpush1.bf16.msra.mxu0 0
    %199 = vmatprep.subr.bf16.mxu0 0
    %200 = vmatpush1.bf16.msra.mxu0 0
    %201 = vmatprep.subr.bf16.mxu0 0
    %202 = vmatpush1.bf16.msra.mxu0 0
    %203 = vmatprep.subr.bf16.mxu0 0
    %204 = vmatpush1.bf16.msra.mxu0 0
    %205 = vmatprep.subr.bf16.mxu0 0
    %206 = vmatpush1.bf16.msra.mxu0 0
    %207 = vmatprep.mubr.bf16.mxu0 0
    %208 = vmatmul.mubr.bf16.gmra.mrb[0].mxu0 %v106
    %v209 = vpop.f32.mrb[0].mxu0
    %v210 = vadd.f32 %v126, %v209
    %v211 = vpop.f32.mrb[0].mxu0
    %v212 = vpop.f32.mrb[0].mxu0
    %v213 = vpop.f32.mrb[0].mxu0
    %214 = vdwg.mxu0
    %v215 = vmax.f32 %v210, 0.0
    %v216 = vpack.c.bf16 %v215, %v215
    %v217 = vld [vmem:[%s3] sm:$0xf]
    %v218 = vld [vmem:[%s3 + $0x4] sm:$0xf]
    %v219 = vld [vmem:[%s3 + $0x8] sm:$0xf]
    %v220 = vld [vmem:[%s3 + $0xc] sm:$0xf]
    %v221 = vld [vmem:[%s3 + $0x10] sm:$0xf]
    %v222 = vld [vmem:[%s3 + $0x14] sm:$0xf]
    %v223 = vld [vmem:[%s3 + $0x18] sm:$0xf]
    %v224 = vld [vmem:[%s3 + $0x1c] sm:$0xf]
    %v225 = vld [vmem:[%s3 + $0x20] sm:$0xf]
    %v226 = vld [vmem:[%s3 + $0x24] sm:$0xf]
    %v227 = vld [vmem:[%s3 + $0x28] sm:$0xf]
    %v228 = vld [vmem:[%s3 + $0x2c] sm:$0xf]
    %v229 = vld [vmem:[%s3 + $0x30] sm:$0xf]
    %v230 = vld [vmem:[%s3 + $0x34] sm:$0xf]
    %v231 = vld [vmem:[%s3 + $0x38] sm:$0xf]
    %v232 = vld [vmem:[%s3 + $0x3c] sm:$0xf]
    %v233 = vlaneseq
    %v234 = vshrl.u32 %v233, 7
    %v235 = vsub.s32 0, %v234
    %v236 = vrot.slane %v40, %v235
    %v253 = vunpack.c.l.b16 %v217
    %v254 = vunpack.c.l.b16 %v218
    %v255 = vunpack.c.l.b16 %v219
    %v256 = vunpack.c.l.b16 %v220
    %v257 = vunpack.c.l.b16 %v221
    %v258 = vunpack.c.l.b16 %v222
    %v259 = vunpack.c.l.b16 %v223
    %v260 = vunpack.c.l.b16 %v224
    %v261 = vunpack.c.l.b16 %v225
    %v262 = vunpack.c.l.b16 %v226
    %v263 = vunpack.c.l.b16 %v227
    %v264 = vunpack.c.l.b16 %v228
    %v265 = vunpack.c.l.b16 %v229
    %v266 = vunpack.c.l.b16 %v230
    %v267 = vunpack.c.l.b16 %v231
    %v268 = vunpack.c.l.b16 %v232
    %v269 = vpack.c.b16 %v254, %v253
    %v270 = vpack.c.b16 %v256, %v255
    %v271 = vpack.c.b16 %v258, %v257
    %v272 = vpack.c.b16 %v260, %v259
    %v273 = vpack.c.b16 %v262, %v261
    %v274 = vpack.c.b16 %v264, %v263
    %v275 = vpack.c.b16 %v266, %v265
    %v276 = vpack.c.b16 %v268, %v267
    %285 = vmatprep.subr.bf16.mxu0 0
    %286 = vmatpush1.bf16.msra.mxu0 %v269
    %287 = vmatprep.subr.bf16.mxu0 0
    %288 = vmatpush1.bf16.msra.mxu0 %v270
    %289 = vmatprep.subr.bf16.mxu0 0
    %290 = vmatpush1.bf16.msra.mxu0 %v271
    %291 = vmatprep.subr.bf16.mxu0 0
    %292 = vmatpush1.bf16.msra.mxu0 %v272
    %293 = vmatprep.subr.bf16.mxu0 0
    %294 = vmatpush1.bf16.msra.mxu0 %v273
    %295 = vmatprep.subr.bf16.mxu0 0
    %296 = vmatpush1.bf16.msra.mxu0 %v274
    %297 = vmatprep.subr.bf16.mxu0 0
    %298 = vmatpush1.bf16.msra.mxu0 %v275
    %299 = vmatprep.subr.bf16.mxu0 0
    %300 = vmatpush1.bf16.msra.mxu0 %v276
    %301 = vmatprep.subr.bf16.mxu0 0
    %302 = vmatpush1.bf16.msra.mxu0 0
    %303 = vmatprep.subr.bf16.mxu0 0
    %304 = vmatpush1.bf16.msra.mxu0 0
    %305 = vmatprep.subr.bf16.mxu0 0
    %306 = vmatpush1.bf16.msra.mxu0 0
    %307 = vmatprep.subr.bf16.mxu0 0
    %308 = vmatpush1.bf16.msra.mxu0 0
    %309 = vmatprep.subr.bf16.mxu0 0
    %310 = vmatpush1.bf16.msra.mxu0 0
    %311 = vmatprep.subr.bf16.mxu0 0
    %312 = vmatpush1.bf16.msra.mxu0 0
    %313 = vmatprep.subr.bf16.mxu0 0
    %314 = vmatpush1.bf16.msra.mxu0 0
    %315 = vmatprep.subr.bf16.mxu0 0
    %316 = vmatpush1.bf16.msra.mxu0 0
    %317 = vmatprep.mubr.bf16.mxu0 0
    %318 = vmatmul.mubr.bf16.gmra.mrb[0].mxu0 %v216
    %v319 = vpop.f32.mrb[0].mxu0
    %v320 = vadd.f32 %v236, %v319
    %v321 = vpop.f32.mrb[0].mxu0
    %v322 = vpop.f32.mrb[0].mxu0
    %v323 = vpop.f32.mrb[0].mxu0
    %324 = vdwg.mxu0
    %vm325 = vcmask 64512
    %326 = vst.msk [vmem:[#allocation5] sm:$0xff] %vm325, %v320
    // Predicated region
    $region26: #{tpu_custom_call.1} parent=1 // pred_check
      _
    $region27: #{tpu_custom_call.1} parent=1 // pred_check_branch
      %328 = sbr.rel (0) target = $region29
    $region28: #{tpu_custom_call.1} parent=1 // pred_region
      %s330 = ssub.s32 128, 128
      %331 = vsyncadd [#allocation4], %s330
      %s333 = sshll.u32 [#allocation5], 4
      %s334 = int_to_ptr.vmem [resolvable:$true] %s333
      %336 = dma.vmem_to_hbm [thread:$0]  %s334, 128, %s5, [#allocation4]
    $region29: #{tpu_custom_call.1} parent=1 // pred_fallthru
      _
    // Predicated region
    $region30: #{tpu_custom_call.1} parent=1 // pred_check
      _
    $region31: #{tpu_custom_call.1} parent=1 // pred_check_branch
      %338 = sbr.rel (0) target = $region33
    $region32: #{tpu_custom_call.1} parent=1 // pred_region
      %339 = dma.done [#allocation4], 128
    $region33: #{tpu_custom_call.1} parent=1 // pred_fallthru
      _
    %340 = vsyncpa [#allocation3], 1
    %341 = vsyncpa [#allocation4], 1

</llo_original>
